<compile_context>
chip_gen: v7x
topology: tpu7x:2x2x1
jax: 0.10.0
libtpu: 0.0.40
codegen_flags: <defaults>
</compile_context>

<pallas_src>
import jax
import jax.numpy as jnp
from jax.experimental import pallas as pl
from jax.experimental.pallas import tpu as pltpu


# --------------------------------- kernel -----------------------------------
def _rope_kernel(q_ref, k_ref, sin_ref, cos_ref, qo_ref, ko_ref):
    # Blocks are lane-dense: (T, L_blk) with L_blk even (multiple of 128 or L).
    Lb = q_ref.shape[-1]
    sin = sin_ref[...]  # (1, L_blk); rotate_every_two's sign already folded in
    cos = cos_ref[...]  # (1, L_blk)

    # even/odd lane mask, computed once per grid step and reused for q and k
    lane = jax.lax.broadcasted_iota(jnp.int32, (1, Lb), 1)
    is_even = (lane & 1) == 0

    def _apply(x_ref, o_ref):
        x = x_ref[...]                               # native dtype, no upcast
        x_p1 = pltpu.roll(x, shift=1, axis=1)        # y[j] = x[j-1]
        x_m1 = pltpu.roll(x, shift=Lb - 1, axis=1)   # y[j] = x[j+1]
        # even lanes take x[j+1], odd lanes take x[j-1]; the minus sign of
        # rotate_every_two lives in the sign-folded sin table.  Roll wrap-around
        # values are never selected because the block length is even.
        rot = jnp.where(is_even, x_m1, x_p1)
        o_ref[...] = (x * cos + rot * sin).astype(o_ref.dtype)

    _apply(q_ref, qo_ref)
    _apply(k_ref, ko_ref)


# ------------------------------ tiling policy --------------------------------
_TARGET_TILE_BYTES = 4 << 20  # ~4 MiB per (T, L_blk) tile of q


def _safe_vmem_cap():
    """0.85 x physical per-core VMEM; conservative 64 MiB fallback (v7x)."""
    try:
        cap = int(pltpu.get_tpu_info().vmem_capacity_bytes)
    except Exception:
        cap = 64 << 20
    return int(cap * 0.85)


def _cdiv(a, b):
    return -(-a // b)


def _choose_tiles(BH, L, itemsize):
    """Pick (T, L_blk, vmem_cap).  T multiple of 8 (or == BH), L_blk multiple
    of 128 (or == L).  8 double-buffered tiles (q,k in + qo,ko out) must fit
    the VMEM budget; tile target ~4 MiB to amortize per-step overhead."""
    vmem_cap = _safe_vmem_cap()
    tile_budget = min(_TARGET_TILE_BYTES,
                      max(64 << 10, (vmem_cap - (4 << 20)) // 8))

    # lane tiling: full L if a minimum-height (8-row) block fits, otherwise a
    # multiple-of-128 slice (even => rotate pairs never straddle a block edge)
    min_rows = min(8, BH)
    if L <= 128 or min_rows * L * itemsize <= tile_budget:
        L_blk = L
    else:
        L_blk = (tile_budget // (min_rows * itemsize)) // 128 * 128
        L_blk = int(min(max(128, L_blk), L))

    # row tiling: largest multiple of 8 within the budget (no divisor req.)
    if BH <= 8:
        T = BH
    else:
        t_max = max(8, tile_budget // max(1, L_blk * itemsize))
        T = int(min(BH, (t_max // 8) * 8))
        # prefer an even row-grid length (v7x: two TensorCores share the grid)
        if _cdiv(BH, T) > 1 and _cdiv(BH, T) % 2 == 1:
            for t in range(T, 7, -8):
                if _cdiv(BH, t) % 2 == 0:
                    T = t
                    break
    return T, L_blk, vmem_cap


# --------------------------------- wrapper -----------------------------------
def rotary_pallas(q, k, pos_emb):
    """q, k: (B, heads, HW, C) [heads_second=True]; pos_emb: (2, H, W, R), R == C."""
    B, heads, HW, C = q.shape
    s, H, W, R = pos_emb.shape
    assert s == 2 and R == C and H * W >= HW
    assert C % 2 == 0, "rotate_every_two requires an even channel dim"

    dtype = q.dtype
    BH = B * heads
    L = HW * C

    # glue: slice pos table to qlen (== klen), fold rotate_every_two's sign
    # into sin (sin'[even] = -sin[even]), flatten lane-dense, match q dtype so
    # the kernel computes fully in the native dtype (bf16 native on v6e/v7x).
    pe = pos_emb.reshape(2, H * W, R)[:, :HW, :]
    sin, cos = pe[0], pe[1]
    c_even = (jnp.arange(R) % 2) == 0
    sin_signed = jnp.where(c_even[None, :], -sin, sin)
    sin_flat = sin_signed.reshape(1, L).astype(dtype)
    cos_flat = cos.reshape(1, L).astype(dtype)

    # lane-dense, native-dtype views (reshape is a bitcast, no copy)
    qf = q.reshape(BH, L)
    kf = k.reshape(BH, L)

    itemsize = jnp.dtype(dtype).itemsize
    T, L_blk, vmem_cap = _choose_tiles(BH, L, itemsize)
    grid = (_cdiv(BH, T), _cdiv(L, L_blk))

    qk_spec = pl.BlockSpec((T, L_blk), lambda i, j: (i, j))
    sc_spec = pl.BlockSpec((1, L_blk), lambda i, j: (0, j))

    # scoped VMEM: q,k,qo,ko double-buffered + sin/cos + headroom, capped at
    # 0.85 x physical VMEM (v7x has only 64 MiB per TensorCore).
    tile_bytes = T * L_blk * itemsize
    vmem_need = 8 * tile_bytes + 4 * L_blk * itemsize + (2 << 20)
    vmem_limit = int(min(vmem_cap, max(vmem_need, 16 << 20)))

    qo, ko = pl.pallas_call(
        _rope_kernel,
        out_shape=(
            jax.ShapeDtypeStruct((BH, L), dtype),
            jax.ShapeDtypeStruct((BH, L), dtype),
        ),
        grid_spec=pltpu.PrefetchScalarGridSpec(
            num_scalar_prefetch=0,
            grid=grid,
            in_specs=[qk_spec, qk_spec, sc_spec, sc_spec],
            out_specs=(qk_spec, qk_spec),
        ),
        compiler_params=pltpu.CompilerParams(
            dimension_semantics=("parallel", "parallel"),
            vmem_limit_bytes=vmem_limit,
        ),
    )(qf, kf, sin_flat, cos_flat)

    return qo.reshape(B, heads, HW, C), ko.reshape(B, heads, HW, C)


# ---------------- pure-JAX reference (mirrors the PyTorch module) ------------
def _rotate_every_two_ref(x):
    x1 = x[..., ::2]
    x2 = x[..., 1::2]
    y = jnp.stack((-x2, x1), axis=-1)
    return y.reshape(*y.shape[:-2], -1)


def _rotary_ref(q, k, pos_emb):
    s, H, W, R = pos_emb.shape
    B, heads, HW, C = q.shape
    pe = pos_emb.reshape(s, 1, H * W, R)[:, :, :HW, :]
    sin, cos = pe[0], pe[1]
    qo = q * cos + _rotate_every_two_ref(q) * sin
    ko = k * cos + _rotate_every_two_ref(k) * sin
    return qo, ko


if __name__ == "__main__":
    key = jax.random.PRNGKey(0)
    kq, kk, kp = jax.random.split(key, 3)

    B, heads, H, W, C = 2, 8, 4, 4, 32
    HW = H * W

    q = jax.random.normal(kq, (B, heads, HW, C), dtype=jnp.float32)
    k = jax.random.normal(kk, (B, heads, HW, C), dtype=jnp.float32)
    # deterministic sin/cos-like positional embedding, shape (2, H, W, C)
    pos_emb = jax.random.normal(kp, (2, H, W, C), dtype=jnp.float32)

    qo, ko = rotary_pallas(q, k, pos_emb)
    jax.block_until_ready((qo, ko))

    q_ref, k_ref = _rotary_ref(q, k, pos_emb)
    assert jnp.allclose(qo, q_ref, atol=1e-5, rtol=1e-5)
    assert jnp.allclose(ko, k_ref, atol=1e-5, rtol=1e-5)

    print("KERNEL_OK")
</pallas_src>

<mosaic_0001>
module attributes {stable_mosaic.version = 11 : i64} {
  func.func @_rope_kernel(%arg0: i32, %arg1: i32, %arg2: memref<16x512xf32, #tpu.memory_space<vmem>>, %arg3: memref<16x512xf32, #tpu.memory_space<vmem>>, %arg4: memref<1x512xf32, #tpu.memory_space<vmem>>, %arg5: memref<1x512xf32, #tpu.memory_space<vmem>>, %arg6: memref<16x512xf32, #tpu.memory_space<vmem>>, %arg7: memref<16x512xf32, #tpu.memory_space<vmem>>) attributes {dimension_semantics = [#tpu.dimension_semantics<parallel>, #tpu.dimension_semantics<parallel>], iteration_bounds = array<i64: 1, 1>, scalar_prefetch = 0 : i64, scratch_operands = 0 : i64, tpu.core_type = #tpu.core_type<tc>, window_params = [{transform_indices = @transform_0, window_bounds = array<i64: 16, 512>}, {transform_indices = @transform_1, window_bounds = array<i64: 16, 512>}, {transform_indices = @transform_2, window_bounds = array<i64: 1, 512>}, {transform_indices = @transform_3, window_bounds = array<i64: 1, 512>}, {transform_indices = @transform_4, window_bounds = array<i64: 16, 512>}, {transform_indices = @transform_5, window_bounds = array<i64: 16, 512>}]} {
    %c0 = arith.constant 0 : index
    %c0_0 = arith.constant 0 : index
    %0 = vector.load %arg4[%c0, %c0_0] : memref<1x512xf32, #tpu.memory_space<vmem>>, vector<1x512xf32>
    %c0_1 = arith.constant 0 : index
    %c0_2 = arith.constant 0 : index
    %1 = vector.load %arg5[%c0_1, %c0_2] : memref<1x512xf32, #tpu.memory_space<vmem>>, vector<1x512xf32>
    %2 = tpu.iota {dimensions = array<i32: 1>} : vector<1x512xi32>
    %c1_i32 = arith.constant 1 : i32
    %3 = vector.broadcast %c1_i32 : i32 to vector<1x512xi32>
    %4 = arith.andi %2, %3 : vector<1x512xi32>
    %c0_i32 = arith.constant 0 : i32
    %5 = vector.broadcast %c0_i32 : i32 to vector<1x512xi32>
    %6 = arith.cmpi eq, %4, %5 : vector<1x512xi32>
    %c0_3 = arith.constant 0 : index
    %c0_4 = arith.constant 0 : index
    %7 = vector.load %arg2[%c0_3, %c0_4] : memref<16x512xf32, #tpu.memory_space<vmem>>, vector<16x512xf32>
    %c1_i32_5 = arith.constant 1 : i32
    %8 = tpu.dynamic_rotate %7 by %c1_i32_5 dim 1 : vector<16x512xf32>, i32 -> vector<16x512xf32>
    %c511_i32 = arith.constant 511 : i32
    %9 = tpu.dynamic_rotate %7 by %c511_i32 dim 1 : vector<16x512xf32>, i32 -> vector<16x512xf32>
    %10 = vector.shape_cast %6 : vector<1x512xi1> to vector<1x512xi1>
    %11 = vector.broadcast %10 : vector<1x512xi1> to vector<16x512xi1>
    %12 = arith.select %11, %9, %8 : vector<16x512xi1>, vector<16x512xf32>
    %13 = vector.broadcast %1 : vector<1x512xf32> to vector<16x512xf32>
    %14 = arith.mulf %7, %13 : vector<16x512xf32>
    %15 = vector.broadcast %0 : vector<1x512xf32> to vector<16x512xf32>
    %16 = arith.mulf %12, %15 : vector<16x512xf32>
    %17 = arith.addf %14, %16 : vector<16x512xf32>
    %c0_6 = arith.constant 0 : index
    %c0_7 = arith.constant 0 : index
    %18 = vector.load %arg6[%c0_6, %c0_7] : memref<16x512xf32, #tpu.memory_space<vmem>>, vector<16x512xf32>
    tpu.vector_store %arg6[%c0_6, %c0_7], %17 {strides = array<i32>} : memref<16x512xf32, #tpu.memory_space<vmem>>, vector<16x512xf32>,
    %c0_8 = arith.constant 0 : index
    %c0_9 = arith.constant 0 : index
    %19 = vector.load %arg3[%c0_8, %c0_9] : memref<16x512xf32, #tpu.memory_space<vmem>>, vector<16x512xf32>
    %c1_i32_10 = arith.constant 1 : i32
    %20 = tpu.dynamic_rotate %19 by %c1_i32_10 dim 1 : vector<16x512xf32>, i32 -> vector<16x512xf32>
    %c511_i32_11 = arith.constant 511 : i32
    %21 = tpu.dynamic_rotate %19 by %c511_i32_11 dim 1 : vector<16x512xf32>, i32 -> vector<16x512xf32>
    %22 = vector.shape_cast %6 : vector<1x512xi1> to vector<1x512xi1>
    %23 = vector.broadcast %22 : vector<1x512xi1> to vector<16x512xi1>
    %24 = arith.select %23, %21, %20 : vector<16x512xi1>, vector<16x512xf32>
    %25 = vector.broadcast %1 : vector<1x512xf32> to vector<16x512xf32>
    %26 = arith.mulf %19, %25 : vector<16x512xf32>
    %27 = vector.broadcast %0 : vector<1x512xf32> to vector<16x512xf32>
    %28 = arith.mulf %24, %27 : vector<16x512xf32>
    %29 = arith.addf %26, %28 : vector<16x512xf32>
    %c0_12 = arith.constant 0 : index
    %c0_13 = arith.constant 0 : index
    %30 = vector.load %arg7[%c0_12, %c0_13] : memref<16x512xf32, #tpu.memory_space<vmem>>, vector<16x512xf32>
    tpu.vector_store %arg7[%c0_12, %c0_13], %29 {strides = array<i32>} : memref<16x512xf32, #tpu.memory_space<vmem>>, vector<16x512xf32>,
    return
  }
  func.func @transform_0(%arg0: i32, %arg1: i32) -> (i32, i32) {
    %c0_i32 = arith.constant 0 : i32
    return %arg0, %arg1 : i32, i32
  }
  func.func @transform_1(%arg0: i32, %arg1: i32) -> (i32, i32) {
    %c0_i32 = arith.constant 0 : i32
    return %arg0, %arg1 : i32, i32
  }
  func.func @transform_2(%arg0: i32, %arg1: i32) -> (i32, i32) {
    %c0_i32 = arith.constant 0 : i32
    %c0_i32_0 = arith.constant 0 : i32
    return %c0_i32, %arg1 : i32, i32
  }
  func.func @transform_3(%arg0: i32, %arg1: i32) -> (i32, i32) {
    %c0_i32 = arith.constant 0 : i32
    %c0_i32_0 = arith.constant 0 : i32
    return %c0_i32, %arg1 : i32, i32
  }
  func.func @transform_4(%arg0: i32, %arg1: i32) -> (i32, i32) {
    %c0_i32 = arith.constant 0 : i32
    return %arg0, %arg1 : i32, i32
  }
  func.func @transform_5(%arg0: i32, %arg1: i32) -> (i32, i32) {
    %c0_i32 = arith.constant 0 : i32
    return %arg0, %arg1 : i32, i32
  }
}

</mosaic_0001>

<llo_original>
// kernel: tpu_custom_call.1
$region0: #{tpu_custom_call.1}
  #allocation0 [shape = 'u32[]', space=smem, size = 0x4, offset = 0x4, fixed_abs, tag = 'smem constant byte address 0x4 - core index']
  #allocation1 [shape = 'u32[144,128]{1,0:T(1,128)}', space=vmem, size = 0x12000, scoped, tag = 'internal scratch']
  %s0 = inlined_call_operand.hbm [shape: f32[16,512], index: 0, kind: input, shape index: {}]
  %s1 = inlined_call_operand.hbm [shape: f32[16,512], index: 1, kind: input, shape index: {}]
  %s2 = inlined_call_operand.vmem [shape: f32[1,512], index: 2, kind: input, shape index: {}]
  %s3 = inlined_call_operand.vmem [shape: f32[1,512], index: 3, kind: input, shape index: {}]
  %s4 = inlined_call_operand.hbm [shape: f32[16,512], index: 4, kind: output, shape index: {0}]
  %s5 = inlined_call_operand.hbm [shape: f32[16,512], index: 5, kind: output, shape index: {1}]
  %6 = xla_tuple %s4, %s5
  %s7 = sld [smem:[#allocation0]]
  $region42: #{tpu_custom_call.1} parent=0
    _
  %s9 = ssub.s32 1, %s7
  %s10 = scalar_select 0, %s9, %s7
  $region1: #{tpu_custom_call.1} parent=0
    #allocation2 [shape = 'u8[32768]{0}', space=vmem, size = 0x8000, scoped, tag = 'input window, operand 0, single buffered']
    #allocation3 [shape = 's32[1]{0}', space=sflag, size = 0x4, scoped, tag = 'scoped memory for tpu_custom_call.1']
    #allocation4 [shape = 's32[1]{0}', space=sflag, size = 0x4, scoped, tag = 'scoped memory for tpu_custom_call.1']
    #allocation5 [shape = 'u8[32768]{0}', space=vmem, size = 0x8000, scoped, tag = 'input window, operand 1, single buffered']
    #allocation6 [shape = 's32[1]{0}', space=sflag, size = 0x4, scoped, tag = 'scoped memory for tpu_custom_call.1']
    #allocation7 [shape = 'u8[32768]{0}', space=vmem, size = 0x8000, scoped, tag = 'output window, operand 0, single buffered']
    #allocation8 [shape = 'u8[32768]{0}', space=vmem, size = 0x8000, scoped, tag = 'output window, operand 1, single buffered']
    #allocation9 [shape = 's32[1]{0}', space=sflag, size = 0x4, scoped, tag = 'scoped memory for tpu_custom_call.1']
    %11 = vsyncpa [#allocation3], 0
    %12 = vsyncpa [#allocation6], 0
    %13 = vsyncpa [#allocation4], 0
    %14 = vsyncpa [#allocation9], 0
    // Predicated region
    $region2: #{tpu_custom_call.1} parent=1 // pred_check
      _
    $region3: #{tpu_custom_call.1} parent=1 // pred_check_branch
      %16 = sbr.rel (0) target = $region5
    $region4: #{tpu_custom_call.1} parent=1 // pred_region
      %s18 = ssub.s32 1024, 1024
      %19 = vsyncadd [#allocation3], %s18
      %s20 = sshll.u32 [#allocation2], 4
      %s21 = int_to_ptr.vmem [resolvable:$true] %s20
      %26 = dma.hbm_to_vmem [thread:$0]  %s0, 1024, %s21, [#allocation3], 512, 512, 32
    $region5: #{tpu_custom_call.1} parent=1 // pred_fallthru
      _
    // Predicated region
    $region6: #{tpu_custom_call.1} parent=1 // pred_check
      _
    $region7: #{tpu_custom_call.1} parent=1 // pred_check_branch
      %28 = sbr.rel (0) target = $region9
    $region8: #{tpu_custom_call.1} parent=1 // pred_region
      %s30 = ssub.s32 1024, 1024
      %31 = vsyncadd [#allocation6], %s30
      %s32 = sshll.u32 [#allocation5], 4
      %s33 = int_to_ptr.vmem [resolvable:$true] %s32
      %38 = dma.hbm_to_vmem [thread:$0]  %s1, 1024, %s33, [#allocation6], 512, 512, 32
    $region9: #{tpu_custom_call.1} parent=1 // pred_fallthru
      _
    // Predicated region
    $region10: #{tpu_custom_call.1} parent=1 // pred_check
      _
    $region11: #{tpu_custom_call.1} parent=1 // pred_check_branch
      %40 = sbr.rel (0) target = $region13
    $region12: #{tpu_custom_call.1} parent=1 // pred_region
      _
    $region13: #{tpu_custom_call.1} parent=1 // pred_fallthru
      _
    // Predicated region
    $region14: #{tpu_custom_call.1} parent=1 // pred_check
      _
    $region15: #{tpu_custom_call.1} parent=1 // pred_check_branch
      %42 = sbr.rel (0) target = $region17
    $region16: #{tpu_custom_call.1} parent=1 // pred_region
      _
    $region17: #{tpu_custom_call.1} parent=1 // pred_fallthru
      _
    // Predicated region
    $region18: #{tpu_custom_call.1} parent=1 // pred_check
      _
    $region19: #{tpu_custom_call.1} parent=1 // pred_check_branch
      %44 = sbr.rel (0) target = $region21
    $region20: #{tpu_custom_call.1} parent=1 // pred_region
      %45 = dma.done [#allocation3], 1024
    $region21: #{tpu_custom_call.1} parent=1 // pred_fallthru
      _
    // Predicated region
    $region22: #{tpu_custom_call.1} parent=1 // pred_check
      _
    $region23: #{tpu_custom_call.1} parent=1 // pred_check_branch
      %47 = sbr.rel (0) target = $region25
    $region24: #{tpu_custom_call.1} parent=1 // pred_region
      %48 = dma.done [#allocation6], 1024
    $region25: #{tpu_custom_call.1} parent=1 // pred_fallthru
      _
    %v49 = vld [vmem:[%s2] sm:$0xf]
    %v50 = vld [vmem:[%s3] sm:$0xf]
    %v51 = vlaneseq
    %v52 = vand.u32 %v51, 127
    %v53 = vadd.s32 %v52, 128
    %v54 = vadd.s32 %v52, 256
    %v55 = vadd.s32 %v52, 384
    %v56 = vand.u32 %v52, 1
    %v57 = vand.u32 %v53, 1
    %v58 = vand.u32 %v54, 1
    %v59 = vand.u32 %v55, 1
    %vm60 = vcmp.eq.s32.totalorder %v56, 0
    %vm61 = vcmp.eq.s32.totalorder %v57, 0
    %vm62 = vcmp.eq.s32.totalorder %v58, 0
    %vm63 = vcmp.eq.s32.totalorder %v59, 0
    %v64 = vld [vmem:[#allocation2] sm:$0xff]
    %v65 = vld [vmem:[#allocation2 + $0x8] sm:$0xff]
    %v66 = vld [vmem:[#allocation2 + $0x10] sm:$0xff]
    %v67 = vld [vmem:[#allocation2 + $0x18] sm:$0xff]
    %v68 = vld [vmem:[#allocation2 + $0x20] sm:$0xff]
    %v69 = vld [vmem:[#allocation2 + $0x28] sm:$0xff]
    %v70 = vld [vmem:[#allocation2 + $0x30] sm:$0xff]
    %v71 = vld [vmem:[#allocation2 + $0x38] sm:$0xff]
    %72 = vrot.lane.b32.xlu0 %v64, 1
    %v73 = vpop.permute.xlu0 %72
    %74 = vrot.lane.b32.xlu0 %v68, 1
    %v75 = vpop.permute.xlu0 %74
    %76 = vrot.lane.b32.xlu0 %v65, 1
    %v77 = vpop.permute.xlu0 %76
    %78 = vrot.lane.b32.xlu0 %v69, 1
    %v79 = vpop.permute.xlu0 %78
    %80 = vrot.lane.b32.xlu0 %v66, 1
    %v81 = vpop.permute.xlu0 %80
    %82 = vrot.lane.b32.xlu0 %v70, 1
    %v83 = vpop.permute.xlu0 %82
    %84 = vrot.lane.b32.xlu0 %v67, 1
    %v85 = vpop.permute.xlu0 %84
    %86 = vrot.lane.b32.xlu0 %v71, 1
    %v87 = vpop.permute.xlu0 %86
    %vm88 = vcmp.lt.s32.totalorder %v52, 1
    %v89 = vsel %vm88, %v81, %v85
    %v90 = vsel %vm88, %v83, %v87
    %v91 = vsel %vm88, %v77, %v81
    %v92 = vsel %vm88, %v79, %v83
    %v93 = vsel %vm88, %v73, %v77
    %v94 = vsel %vm88, %v75, %v79
    %v95 = vsel %vm88, %v85, %v73
    %v96 = vsel %vm88, %v87, %v75
    %97 = vrot.lane.b32.xlu0 %v64, 127
    %v98 = vpop.permute.xlu0 %97
    %99 = vrot.lane.b32.xlu0 %v68, 127
    %v100 = vpop.permute.xlu0 %99
    %101 = vrot.lane.b32.xlu0 %v65, 127
    %v102 = vpop.permute.xlu0 %101
    %103 = vrot.lane.b32.xlu0 %v69, 127
    %v104 = vpop.permute.xlu0 %103
    %105 = vrot.lane.b32.xlu0 %v66, 127
    %v106 = vpop.permute.xlu0 %105
    %107 = vrot.lane.b32.xlu0 %v70, 127
    %v108 = vpop.permute.xlu0 %107
    %109 = vrot.lane.b32.xlu0 %v67, 127
    %v110 = vpop.permute.xlu0 %109
    %111 = vrot.lane.b32.xlu0 %v71, 127
    %v112 = vpop.permute.xlu0 %111
    %vm113 = vcmp.lt.s32.totalorder %v52, 127
    %v114 = vsel %vm113, %v106, %v110
    %v115 = vsel %vm113, %v108, %v112
    %v116 = vsel %vm113, %v102, %v106
    %v117 = vsel %vm113, %v104, %v108
    %v118 = vsel %vm113, %v98, %v102
    %v119 = vsel %vm113, %v100, %v104
    %v120 = vsel %vm113, %v110, %v98
    %v121 = vsel %vm113, %v112, %v100
    %v122 = vsel %vm60, 1, 0
    %v123 = vsel %vm61, 1, 0
    %v124 = vsel %vm62, 1, 0
    %v125 = vsel %vm63, 1, 0
    %vm126 = vcmp.eq.s32.totalorder %v122, 1
    %vm127 = vcmp.eq.s32.totalorder %v123, 1
    %vm128 = vcmp.eq.s32.totalorder %v124, 1
    %vm129 = vcmp.eq.s32.totalorder %v125, 1
    %v130 = vsel %vm126, %v118, %v95
    %v131 = vsel %vm127, %v116, %v93
    %v132 = vsel %vm128, %v114, %v91
    %v133 = vsel %vm129, %v120, %v89
    %v134 = vsel %vm126, %v119, %v96
    %v135 = vsel %vm127, %v117, %v94
    %v136 = vsel %vm128, %v115, %v92
    %v137 = vsel %vm129, %v121, %v90
    %v139 = vlaneseq
    %v140 = vshrl.u32 %v139, 7
    %v141 = vsub.s32 0, %v140
    %v142 = vrot.slane %v50, %v141
    %v143 = vlaneseq
    %v144 = vshrl.u32 %v143, 7
    %v145 = vsub.s32 1, %v144
    %v146 = vrot.slane %v50, %v145
    %v147 = vlaneseq
    %v148 = vshrl.u32 %v147, 7
    %v149 = vsub.s32 2, %v148
    %v150 = vrot.slane %v50, %v149
    %v151 = vlaneseq
    %v152 = vshrl.u32 %v151, 7
    %v153 = vsub.s32 3, %v152
    %v154 = vrot.slane %v50, %v153
    %v159 = vmul.f32 %v64, %v142
    %v160 = vmul.f32 %v65, %v146
    %v161 = vmul.f32 %v66, %v150
    %v162 = vmul.f32 %v67, %v154
    %v163 = vmul.f32 %v68, %v142
    %v164 = vmul.f32 %v69, %v146
    %v165 = vmul.f32 %v70, %v150
    %v166 = vmul.f32 %v71, %v154
    %v168 = vlaneseq
    %v169 = vshrl.u32 %v168, 7
    %v170 = vsub.s32 0, %v169
    %v171 = vrot.slane %v49, %v170
    %v172 = vlaneseq
    %v173 = vshrl.u32 %v172, 7
    %v174 = vsub.s32 1, %v173
    %v175 = vrot.slane %v49, %v174
    %v176 = vlaneseq
    %v177 = vshrl.u32 %v176, 7
    %v178 = vsub.s32 2, %v177
    %v179 = vrot.slane %v49, %v178
    %v180 = vlaneseq
    %v181 = vshrl.u32 %v180, 7
    %v182 = vsub.s32 3, %v181
    %v183 = vrot.slane %v49, %v182
    %v188 = vmul.f32 %v130, %v171
    %v189 = vmul.f32 %v131, %v175
    %v190 = vmul.f32 %v132, %v179
    %v191 = vmul.f32 %v133, %v183
    %v192 = vmul.f32 %v134, %v171
    %v193 = vmul.f32 %v135, %v175
    %v194 = vmul.f32 %v136, %v179
    %v195 = vmul.f32 %v137, %v183
    %v196 = vadd.f32 %v159, %v188
    %v197 = vadd.f32 %v160, %v189
    %v198 = vadd.f32 %v161, %v190
    %v199 = vadd.f32 %v162, %v191
    %v200 = vadd.f32 %v163, %v192
    %v201 = vadd.f32 %v164, %v193
    %v202 = vadd.f32 %v165, %v194
    %v203 = vadd.f32 %v166, %v195
    %204 = vst [vmem:[#allocation7] sm:$0xff] %v196
    %205 = vst [vmem:[#allocation7 + $0x8] sm:$0xff] %v197
    %206 = vst [vmem:[#allocation7 + $0x10] sm:$0xff] %v198
    %207 = vst [vmem:[#allocation7 + $0x18] sm:$0xff] %v199
    %208 = vst [vmem:[#allocation7 + $0x20] sm:$0xff] %v200
    %209 = vst [vmem:[#allocation7 + $0x28] sm:$0xff] %v201
    %210 = vst [vmem:[#allocation7 + $0x30] sm:$0xff] %v202
    %211 = vst [vmem:[#allocation7 + $0x38] sm:$0xff] %v203
    %v212 = vld [vmem:[#allocation5] sm:$0xff]
    %v213 = vld [vmem:[#allocation5 + $0x8] sm:$0xff]
    %v214 = vld [vmem:[#allocation5 + $0x10] sm:$0xff]
    %v215 = vld [vmem:[#allocation5 + $0x18] sm:$0xff]
    %v216 = vld [vmem:[#allocation5 + $0x20] sm:$0xff]
    %v217 = vld [vmem:[#allocation5 + $0x28] sm:$0xff]
    %v218 = vld [vmem:[#allocation5 + $0x30] sm:$0xff]
    %v219 = vld [vmem:[#allocation5 + $0x38] sm:$0xff]
    %220 = vrot.lane.b32.xlu0 %v212, 1
    %v221 = vpop.permute.xlu0 %220
    %222 = vrot.lane.b32.xlu0 %v216, 1
    %v223 = vpop.permute.xlu0 %222
    %224 = vrot.lane.b32.xlu0 %v213, 1
    %v225 = vpop.permute.xlu0 %224
    %226 = vrot.lane.b32.xlu0 %v217, 1
    %v227 = vpop.permute.xlu0 %226
    %228 = vrot.lane.b32.xlu0 %v214, 1
    %v229 = vpop.permute.xlu0 %228
    %230 = vrot.lane.b32.xlu0 %v218, 1
    %v231 = vpop.permute.xlu0 %230
    %232 = vrot.lane.b32.xlu0 %v215, 1
    %v233 = vpop.permute.xlu0 %232
    %234 = vrot.lane.b32.xlu0 %v219, 1
    %v235 = vpop.permute.xlu0 %234
    %v236 = vsel %vm88, %v229, %v233
    %v237 = vsel %vm88, %v231, %v235
    %v238 = vsel %vm88, %v225, %v229
    %v239 = vsel %vm88, %v227, %v231
    %v240 = vsel %vm88, %v221, %v225
    %v241 = vsel %vm88, %v223, %v227
    %v242 = vsel %vm88, %v233, %v221
    %v243 = vsel %vm88, %v235, %v223
    %244 = vrot.lane.b32.xlu0 %v212, 127
    %v245 = vpop.permute.xlu0 %244
    %246 = vrot.lane.b32.xlu0 %v216, 127
    %v247 = vpop.permute.xlu0 %246
    %248 = vrot.lane.b32.xlu0 %v213, 127
    %v249 = vpop.permute.xlu0 %248
    %250 = vrot.lane.b32.xlu0 %v217, 127
    %v251 = vpop.permute.xlu0 %250
    %252 = vrot.lane.b32.xlu0 %v214, 127
    %v253 = vpop.permute.xlu0 %252
    %254 = vrot.lane.b32.xlu0 %v218, 127
    %v255 = vpop.permute.xlu0 %254
    %256 = vrot.lane.b32.xlu0 %v215, 127
    %v257 = vpop.permute.xlu0 %256
    %258 = vrot.lane.b32.xlu0 %v219, 127
    %v259 = vpop.permute.xlu0 %258
    %v260 = vsel %vm113, %v253, %v257
    %v261 = vsel %vm113, %v255, %v259
    %v262 = vsel %vm113, %v249, %v253
    %v263 = vsel %vm113, %v251, %v255
    %v264 = vsel %vm113, %v245, %v249
    %v265 = vsel %vm113, %v247, %v251
    %v266 = vsel %vm113, %v257, %v245
    %v267 = vsel %vm113, %v259, %v247
    %v268 = vsel %vm126, %v264, %v242
    %v269 = vsel %vm127, %v262, %v240
    %v270 = vsel %vm128, %v260, %v238
    %v271 = vsel %vm129, %v266, %v236
    %v272 = vsel %vm126, %v265, %v243
    %v273 = vsel %vm127, %v263, %v241
    %v274 = vsel %vm128, %v261, %v239
    %v275 = vsel %vm129, %v267, %v237
    %v276 = vmul.f32 %v212, %v142
    %v277 = vmul.f32 %v213, %v146
    %v278 = vmul.f32 %v214, %v150
    %v279 = vmul.f32 %v215, %v154
    %v280 = vmul.f32 %v216, %v142
    %v281 = vmul.f32 %v217, %v146
    %v282 = vmul.f32 %v218, %v150
    %v283 = vmul.f32 %v219, %v154
    %v284 = vmul.f32 %v268, %v171
    %v285 = vmul.f32 %v269, %v175
    %v286 = vmul.f32 %v270, %v179
    %v287 = vmul.f32 %v271, %v183
    %v288 = vmul.f32 %v272, %v171
    %v289 = vmul.f32 %v273, %v175
    %v290 = vmul.f32 %v274, %v179
    %v291 = vmul.f32 %v275, %v183
    %v292 = vadd.f32 %v276, %v284
    %v293 = vadd.f32 %v277, %v285
    %v294 = vadd.f32 %v278, %v286
    %v295 = vadd.f32 %v279, %v287
    %v296 = vadd.f32 %v280, %v288
    %v297 = vadd.f32 %v281, %v289
    %v298 = vadd.f32 %v282, %v290
    %v299 = vadd.f32 %v283, %v291
    %300 = vst [vmem:[#allocation8] sm:$0xff] %v292
    %301 = vst [vmem:[#allocation8 + $0x8] sm:$0xff] %v293
    %302 = vst [vmem:[#allocation8 + $0x10] sm:$0xff] %v294
    %303 = vst [vmem:[#allocation8 + $0x18] sm:$0xff] %v295
    %304 = vst [vmem:[#allocation8 + $0x20] sm:$0xff] %v296
    %305 = vst [vmem:[#allocation8 + $0x28] sm:$0xff] %v297
    %306 = vst [vmem:[#allocation8 + $0x30] sm:$0xff] %v298
    %307 = vst [vmem:[#allocation8 + $0x38] sm:$0xff] %v299
    // Predicated region
    $region26: #{tpu_custom_call.1} parent=1 // pred_check
      _
    $region27: #{tpu_custom_call.1} parent=1 // pred_check_branch
      %309 = sbr.rel (0) target = $region29
    $region28: #{tpu_custom_call.1} parent=1 // pred_region
      %s311 = ssub.s32 1024, 1024
      %312 = vsyncadd [#allocation4], %s311
      %s313 = sshll.u32 [#allocation7], 4
      %s314 = int_to_ptr.vmem [resolvable:$true] %s313
      %319 = dma.vmem_to_hbm [thread:$0]  %s314, 1024, %s4, [#allocation4], 512, 512, 32
    $region29: #{tpu_custom_call.1} parent=1 // pred_fallthru
      _
    // Predicated region
    $region30: #{tpu_custom_call.1} parent=1 // pred_check
      _
    $region31: #{tpu_custom_call.1} parent=1 // pred_check_branch
      %321 = sbr.rel (0) target = $region33
    $region32: #{tpu_custom_call.1} parent=1 // pred_region
      %s323 = ssub.s32 1024, 1024
      %324 = vsyncadd [#allocation9], %s323
      %s325 = sshll.u32 [#allocation8], 4
      %s326 = int_to_ptr.vmem [resolvable:$true] %s325
      %331 = dma.vmem_to_hbm [thread:$0]  %s326, 1024, %s5, [#allocation9], 512, 512, 32
    $region33: #{tpu_custom_call.1} parent=1 // pred_fallthru
      _
    // Predicated region
    $region34: #{tpu_custom_call.1} parent=1 // pred_check
      _
    $region35: #{tpu_custom_call.1} parent=1 // pred_check_branch
      %333 = sbr.rel (0) target = $region37
    $region36: #{tpu_custom_call.1} parent=1 // pred_region
      %334 = dma.done [#allocation4], 1024
    $region37: #{tpu_custom_call.1} parent=1 // pred_fallthru
      _
    // Predicated region
    $region38: #{tpu_custom_call.1} parent=1 // pred_check
      _
    $region39: #{tpu_custom_call.1} parent=1 // pred_check_branch
      %336 = sbr.rel (0) target = $region41
    $region40: #{tpu_custom_call.1} parent=1 // pred_region
      %337 = dma.done [#allocation9], 1024
    $region41: #{tpu_custom_call.1} parent=1 // pred_fallthru
      _
    %338 = vsyncpa [#allocation3], 1
    %339 = vsyncpa [#allocation6], 1
    %340 = vsyncpa [#allocation4], 1
    %341 = vsyncpa [#allocation9], 1

</llo_original>
